<compile_context>
chip_gen: v5e
topology: v5e:2x2
jax: 0.10.0
libtpu: 0.0.40
codegen_flags: <defaults>
</compile_context>

<pallas_src>
import math

import jax
import jax.numpy as jnp
from jax.experimental import pallas as pl
from jax.experimental.pallas import tpu as pltpu


def _round_up(a: int, b: int) -> int:
    return ((a + b - 1) // b) * b


def _device_block_defaults():
    """(x-block target bytes, vmem_limit_bytes or None, has_two_tensorcores)."""
    kind = ""
    try:
        kind = jax.devices()[0].device_kind.lower()
    except Exception:
        pass
    if "v7" in kind:
        # 3.2 TB/s: ~8 MiB blocks keep the ~0.35us/step overhead <10%;
        # double-buffered x+out (~32 MiB) needs the scoped limit raised
        # (physical VMEM/TC is 64 MiB).
        return 8 * 1024 * 1024, 40 * 1024 * 1024, True
    if "v6" in kind:
        # 1.4 TB/s: 4 MiB blocks; fits the 32 MiB scoped default unchanged.
        return 4 * 1024 * 1024, None, False
    # v5e / unknown: 16 MiB scoped default -> stay at 2 MiB blocks.
    return 2 * 1024 * 1024, None, False


def _deletion_kernel(x_ref, m_ref, e_ref, w_ref, o_ref):
    x = x_ref[...]                                             # (tm, pd) f32
    # Row-wise deletion matmul; block-diagonal weight keeps packed rows apart.
    y = jnp.dot(x, w_ref[...], preferred_element_type=jnp.float32)
    # Expand the compact (tm, P) {0,1} mask to (tm, pd) on the (idle) MXU.
    m = jnp.dot(m_ref[...].astype(jnp.float32), e_ref[...],
                preferred_element_type=jnp.float32)
    o_ref[...] = jnp.where(m != 0.0, y, x).astype(o_ref.dtype)


def deletion_layer_kg(x, mask, deletion_weight, *, tm=None):
    """Pallas TPU implementation of DeletionLayerKG.forward.

    x:               (N, dim) float32
    mask:            (N,)     bool (castable); None -> identity (as in PyTorch)
    deletion_weight: (dim, dim) float32
    """
    if mask is None:
        return x

    N, dim = x.shape
    mask = mask.astype(jnp.bool_)

    # Lane-dense packing factor: pack P consecutive rows into lcm(dim, 128)
    # lanes (generalizes to dims that don't divide 128).  Fall back to P=1 if
    # the block-diagonal weight would get unreasonably large.
    P, packed_dim = 1, dim
    if dim < 128:
        lcm = math.lcm(dim, 128)
        if lcm <= 512:
            packed_dim, P = lcm, lcm // dim
    # TODO(synk): for very large dim the resident (dim, dim) weight block can
    # exceed VMEM; that regime would need a K/N-tiled weight grid axis.

    target_bytes, vmem_limit, two_cores = _device_block_defaults()

    # Pad only to a multiple of P (<= P-1 rows; zero-cost when N % P == 0).
    n_rem = (-N) % P
    if n_rem:
        x = jnp.pad(x, ((0, n_rem), (0, 0)))
        mask = jnp.pad(mask, (0, n_rem))
    n_pack = (N + n_rem) // P

    # Row tile (in packed rows): per-generation byte target, multiple of 32,
    # clamped so small inputs run in one step; on dual-TC chips cap it so the
    # grid has at least 2 steps when there is enough work.
    if tm is None:
        tm = max(32, (target_bytes // (packed_dim * 4)) // 32 * 32)
    tm_eff = min(_round_up(tm, 32), _round_up(n_pack, 32))
    if two_cores:
        tm_eff = min(tm_eff, _round_up(pl.cdiv(n_pack, 2), 32))
    grid = pl.cdiv(n_pack, tm_eff)

    # Lane-dense packed view of x (a contiguous row-major reshape: no copy) and
    # the compact int8 mask (P bytes per packed row).
    x_packed = x.reshape(n_pack, packed_dim)
    m_compact = mask.reshape(n_pack, P).astype(jnp.int8)

    # Block-diagonal weight (P copies of W on the diagonal) and the 0/1 mask
    # expansion matrix E[p, p*dim + j] = 1.
    w_bd = jnp.kron(jnp.eye(P, dtype=deletion_weight.dtype), deletion_weight)
    e_expand = jnp.kron(jnp.eye(P, dtype=jnp.float32),
                        jnp.ones((1, dim), dtype=jnp.float32))

    out_packed = pl.pallas_call(
        _deletion_kernel,
        out_shape=jax.ShapeDtypeStruct((n_pack, packed_dim), x.dtype),
        grid_spec=pltpu.PrefetchScalarGridSpec(
            num_scalar_prefetch=0,
            grid=(grid,),
            in_specs=[
                pl.BlockSpec((tm_eff, packed_dim), lambda i: (i, 0)),     # x rows
                pl.BlockSpec((tm_eff, P), lambda i: (i, 0)),              # compact mask
                pl.BlockSpec((P, packed_dim), lambda i: (0, 0)),          # mask expander
                pl.BlockSpec((packed_dim, packed_dim), lambda i: (0, 0)), # block-diag W
            ],
            out_specs=pl.BlockSpec((tm_eff, packed_dim), lambda i: (i, 0)),
        ),
        compiler_params=pltpu.CompilerParams(
            dimension_semantics=("parallel",),
            vmem_limit_bytes=vmem_limit,
        ),
    )(x_packed, m_compact, e_expand, w_bd)

    return out_packed.reshape(n_pack * P, dim)[:N]


if __name__ == "__main__":
    key = jax.random.PRNGKey(0)
    k_x, k_m = jax.random.split(key)

    N, dim = 128, 32
    x = jax.random.normal(k_x, (N, dim), dtype=jnp.float32)
    mask = jax.random.bernoulli(k_m, p=0.5, shape=(N,))

    # nn.Parameter(torch.ones(dim, dim) / 1000)
    deletion_weight = jnp.ones((dim, dim), dtype=jnp.float32) / 1000.0

    fwd = jax.jit(deletion_layer_kg)
    out = jax.block_until_ready(fwd(x, mask, deletion_weight))

    # Reference (plain JAX) correctness check.
    ref = jnp.where(mask[:, None], x @ deletion_weight, x)
    assert out.shape == (N, dim)
    assert jnp.allclose(out, ref, atol=1e-5, rtol=1e-5), "mismatch vs reference"

    print("KERNEL_OK")
</pallas_src>

<mosaic_0001>
module attributes {stable_mosaic.version = 11 : i64} {
  func.func @_deletion_kernel(%arg0: i32, %arg1: memref<32x128xf32, #tpu.memory_space<vmem>>, %arg2: memref<32x4xi8, #tpu.memory_space<vmem>>, %arg3: memref<4x128xf32, #tpu.memory_space<vmem>>, %arg4: memref<128x128xf32, #tpu.memory_space<vmem>>, %arg5: memref<32x128xf32, #tpu.memory_space<vmem>>) attributes {dimension_semantics = [#tpu.dimension_semantics<parallel>], iteration_bounds = array<i64: 1>, scalar_prefetch = 0 : i64, scratch_operands = 0 : i64, tpu.core_type = #tpu.core_type<tc>, window_params = [{transform_indices = @transform_0, window_bounds = array<i64: 32, 128>}, {transform_indices = @transform_1, window_bounds = array<i64: 32, 4>}, {pipeline_mode = #tpu.pipeline_mode<synchronous>, transform_indices = @transform_2, window_bounds = array<i64: 4, 128>}, {pipeline_mode = #tpu.pipeline_mode<synchronous>, transform_indices = @transform_3, window_bounds = array<i64: 128, 128>}, {transform_indices = @transform_4, window_bounds = array<i64: 32, 128>}]} {
    %c0 = arith.constant 0 : index
    %c0_0 = arith.constant 0 : index
    %0 = vector.load %arg1[%c0, %c0_0] : memref<32x128xf32, #tpu.memory_space<vmem>>, vector<32x128xf32>
    %c0_1 = arith.constant 0 : index
    %c0_2 = arith.constant 0 : index
    %1 = vector.load %arg4[%c0_1, %c0_2] : memref<128x128xf32, #tpu.memory_space<vmem>>, vector<128x128xf32>
    %cst = arith.constant dense<0.000000e+00> : vector<32x128xf32>
    %2 = tpu.matmul %0, %1, %cst {dimension_numbers = #tpu.dot_dimension_numbers<[1], [0], [0], [1], [0, 0, 1, 1], [], []>} : vector<32x128xf32>, vector<128x128xf32>, vector<32x128xf32> -> vector<32x128xf32>
    %c0_3 = arith.constant 0 : index
    %c0_4 = arith.constant 0 : index
    %3 = vector.load %arg2[%c0_3, %c0_4] : memref<32x4xi8, #tpu.memory_space<vmem>>, vector<32x4xi8>
    %4 = arith.sitofp %3 : vector<32x4xi8> to vector<32x4xf32>
    %c0_5 = arith.constant 0 : index
    %c0_6 = arith.constant 0 : index
    %5 = vector.load %arg3[%c0_5, %c0_6] : memref<4x128xf32, #tpu.memory_space<vmem>>, vector<4x128xf32>
    %cst_7 = arith.constant dense<0.000000e+00> : vector<32x128xf32>
    %6 = tpu.matmul %4, %5, %cst_7 {dimension_numbers = #tpu.dot_dimension_numbers<[1], [0], [0], [1], [0, 0, 1, 1], [], []>} : vector<32x4xf32>, vector<4x128xf32>, vector<32x128xf32> -> vector<32x128xf32>
    %cst_8 = arith.constant 0.000000e+00 : f32
    %7 = vector.broadcast %cst_8 : f32 to vector<32x128xf32>
    %8 = arith.cmpf one, %6, %7 : vector<32x128xf32>
    %9 = arith.select %8, %2, %0 : vector<32x128xi1>, vector<32x128xf32>
    %c0_9 = arith.constant 0 : index
    %c0_10 = arith.constant 0 : index
    %10 = vector.load %arg5[%c0_9, %c0_10] : memref<32x128xf32, #tpu.memory_space<vmem>>, vector<32x128xf32>
    tpu.vector_store %arg5[%c0_9, %c0_10], %9 {strides = array<i32>} : memref<32x128xf32, #tpu.memory_space<vmem>>, vector<32x128xf32>,
    return
  }
  func.func @transform_0(%arg0: i32) -> (i32, i32) {
    %c0_i32 = arith.constant 0 : i32
    %c0_i32_0 = arith.constant 0 : i32
    return %arg0, %c0_i32 : i32, i32
  }
  func.func @transform_1(%arg0: i32) -> (i32, i32) {
    %c0_i32 = arith.constant 0 : i32
    %c0_i32_0 = arith.constant 0 : i32
    return %arg0, %c0_i32 : i32, i32
  }
  func.func @transform_2(%arg0: i32) -> (i32, i32) {
    %c0_i32 = arith.constant 0 : i32
    %c0_i32_0 = arith.constant 0 : i32
    %c0_i32_1 = arith.constant 0 : i32
    return %c0_i32, %c0_i32_0 : i32, i32
  }
  func.func @transform_3(%arg0: i32) -> (i32, i32) {
    %c0_i32 = arith.constant 0 : i32
    %c0_i32_0 = arith.constant 0 : i32
    %c0_i32_1 = arith.constant 0 : i32
    return %c0_i32, %c0_i32_0 : i32, i32
  }
  func.func @transform_4(%arg0: i32) -> (i32, i32) {
    %c0_i32 = arith.constant 0 : i32
    %c0_i32_0 = arith.constant 0 : i32
    return %arg0, %c0_i32 : i32, i32
  }
}

</mosaic_0001>

<llo_original>
// kernel: deletion_layer_kg.1
$region0: #{deletion_layer_kg.1}
  #allocation0 [shape = 'u32[]', space=smem, size = 0x4, offset = 0x4, fixed_abs, tag = 'smem constant byte address 0x4 - core index']
  #allocation1 [shape = 'u32[72,128]{1,0:T(1,128)}', space=vmem, size = 0x9000, scoped, tag = 'internal scratch']
  %s0 = inlined_call_operand.vmem [shape: f32[32,128], index: 0, kind: input, shape index: {}]
  %s1 = inlined_call_operand.vmem [shape: s8[32,4], index: 1, kind: input, shape index: {}]
  %s2 = inlined_call_operand.vmem [shape: f32[4,128], index: 2, kind: input, shape index: {}]
  %s3 = inlined_call_operand.vmem [shape: f32[128,128], index: 3, kind: input, shape index: {}]
  %s4 = inlined_call_operand.vmem [shape: f32[32,128], index: 4, kind: output, shape index: {}]
  %s5 = sld [smem:[#allocation0]]
  $region26: #{deletion_layer_kg.1} parent=0
    _
  %s7 = ssub.s32 1, %s5
  %s8 = scalar_select 0, %s7, %s5
  // Predicated region
  $region2: #{deletion_layer_kg.1} parent=0 // pred_check
    _
  $region3: #{deletion_layer_kg.1} parent=0 // pred_check_branch
    %10 = sbr.rel (0) target = $region5
  $region4: #{deletion_layer_kg.1} parent=0 // pred_region
    _
  $region5: #{deletion_layer_kg.1} parent=0 // pred_fallthru
    _
  // Predicated region
  $region6: #{deletion_layer_kg.1} parent=0 // pred_check
    _
  $region7: #{deletion_layer_kg.1} parent=0 // pred_check_branch
    %12 = sbr.rel (0) target = $region9
  $region8: #{deletion_layer_kg.1} parent=0 // pred_region
    _
  $region9: #{deletion_layer_kg.1} parent=0 // pred_fallthru
    _
  // Predicated region
  $region10: #{deletion_layer_kg.1} parent=0 // pred_check
    _
  $region11: #{deletion_layer_kg.1} parent=0 // pred_check_branch
    %14 = sbr.rel (0) target = $region13
  $region12: #{deletion_layer_kg.1} parent=0 // pred_region
    _
  $region13: #{deletion_layer_kg.1} parent=0 // pred_fallthru
    _
  // Predicated region
  $region14: #{deletion_layer_kg.1} parent=0 // pred_check
    _
  $region15: #{deletion_layer_kg.1} parent=0 // pred_check_branch
    %16 = sbr.rel (0) target = $region17
  $region16: #{deletion_layer_kg.1} parent=0 // pred_region
    _
  $region17: #{deletion_layer_kg.1} parent=0 // pred_fallthru
    _
  %v17 = vld [vmem:[%s0] sm:$0xff]
  %v18 = vld [vmem:[%s0 + $0x8] sm:$0xff]
  %v19 = vld [vmem:[%s0 + $0x10] sm:$0xff]
  %v20 = vld [vmem:[%s0 + $0x18] sm:$0xff]
  %v21 = vld [vmem:[%s3] sm:$0xff]
  %v22 = vld [vmem:[%s3 + $0x8] sm:$0xff]
  %v23 = vld [vmem:[%s3 + $0x10] sm:$0xff]
  %v24 = vld [vmem:[%s3 + $0x18] sm:$0xff]
  %v25 = vld [vmem:[%s3 + $0x20] sm:$0xff]
  %v26 = vld [vmem:[%s3 + $0x28] sm:$0xff]
  %v27 = vld [vmem:[%s3 + $0x30] sm:$0xff]
  %v28 = vld [vmem:[%s3 + $0x38] sm:$0xff]
  %v29 = vld [vmem:[%s3 + $0x40] sm:$0xff]
  %v30 = vld [vmem:[%s3 + $0x48] sm:$0xff]
  %v31 = vld [vmem:[%s3 + $0x50] sm:$0xff]
  %v32 = vld [vmem:[%s3 + $0x58] sm:$0xff]
  %v33 = vld [vmem:[%s3 + $0x60] sm:$0xff]
  %v34 = vld [vmem:[%s3 + $0x68] sm:$0xff]
  %v35 = vld [vmem:[%s3 + $0x70] sm:$0xff]
  %v36 = vld [vmem:[%s3 + $0x78] sm:$0xff]
  %37 = vmatpush.msra.mxu0 %v36
  %38 = vmatpush.msra.mxu0 %v35
  %39 = vmatpush.msra.mxu0 %v34
  %40 = vmatpush.msra.mxu0 %v33
  %41 = vmatpush.msra.mxu0 %v32
  %42 = vmatpush.msra.mxu0 %v31
  %43 = vmatpush.msra.mxu0 %v30
  %44 = vmatpush.msra.mxu0 %v29
  %45 = vmatpush.msra.mxu0 %v28
  %46 = vmatpush.msra.mxu0 %v27
  %47 = vmatpush.msra.mxu0 %v26
  %48 = vmatpush.msra.mxu0 %v25
  %49 = vmatpush.msra.mxu0 %v24
  %50 = vmatpush.msra.mxu0 %v23
  %51 = vmatpush.msra.mxu0 %v22
  %52 = vmatpush.msra.mxu0 %v21
  %53 = vmatmul.f32.gmra.mxu0 %v17
  %v54 = vpop.f32.mrf.mxu0
  %v55 = vadd.f32 0.0, %v54
  %56 = vmatmul.f32.gmra.mxu0 %v18
  %v57 = vpop.f32.mrf.mxu0
  %v58 = vadd.f32 0.0, %v57
  %59 = vmatmul.f32.gmra.mxu0 %v19
  %v60 = vpop.f32.mrf.mxu0
  %v61 = vadd.f32 0.0, %v60
  %62 = vmatmul.f32.gmra.mxu0 %v20
  %v63 = vpop.f32.mrf.mxu0
  %v64 = vadd.f32 0.0, %v63
  %65 = vdwg.mxu0
  %v66 = vld [vmem:[%s1] sm:$0xff]
  %v67 = vunpack.c.0.s8 %v66
  %v68 = vunpack.c.1.s8 %v66
  %v69 = vunpack.c.2.s8 %v66
  %v70 = vunpack.c.3.s8 %v66
  %v71 = vcvt.s32.f32 %v67
  %v72 = vcvt.s32.f32 %v68
  %v73 = vcvt.s32.f32 %v69
  %v74 = vcvt.s32.f32 %v70
  %v75 = vld [vmem:[%s2] sm:$0xf]
  %vm76 = vcmask 31744
  %v78 = vsel %vm76, %v71, 0
  %v81 = vsel %vm76, %v72, 0
  %v84 = vsel %vm76, %v73, 0
  %v87 = vsel %vm76, %v74, 0
  %vm89 = vcmask 1043456
  %v91 = vsel %vm89, %v75, 0
  %93 = vmatpush.msra.mxu0 0.0
  %94 = vmatpush.msra.mxu0 0.0
  %95 = vmatpush.msra.mxu0 0.0
  %96 = vmatpush.msra.mxu0 0.0
  %97 = vmatpush.msra.mxu0 0.0
  %98 = vmatpush.msra.mxu0 0.0
  %99 = vmatpush.msra.mxu0 0.0
  %100 = vmatpush.msra.mxu0 0.0
  %101 = vmatpush.msra.mxu0 0.0
  %102 = vmatpush.msra.mxu0 0.0
  %103 = vmatpush.msra.mxu0 0.0
  %104 = vmatpush.msra.mxu0 0.0
  %105 = vmatpush.msra.mxu0 0.0
  %106 = vmatpush.msra.mxu0 0.0
  %107 = vmatpush.msra.mxu0 0.0
  %108 = vmatpush.msra.mxu0 %v91
  %109 = vmatmul.f32.gmra.mxu0 %v78
  %v110 = vpop.f32.mrf.mxu0
  %v111 = vadd.f32 0.0, %v110
  %112 = vmatmul.f32.gmra.mxu0 %v81
  %v113 = vpop.f32.mrf.mxu0
  %v114 = vadd.f32 0.0, %v113
  %115 = vmatmul.f32.gmra.mxu0 %v84
  %v116 = vpop.f32.mrf.mxu0
  %v117 = vadd.f32 0.0, %v116
  %118 = vmatmul.f32.gmra.mxu0 %v87
  %v119 = vpop.f32.mrf.mxu0
  %v120 = vadd.f32 0.0, %v119
  %121 = vdwg.mxu0
  %vm122 = vcmp.ne.f32.partialorder %v111, 0.0
  %vm123 = vcmp.ne.f32.partialorder %v114, 0.0
  %vm124 = vcmp.ne.f32.partialorder %v117, 0.0
  %vm125 = vcmp.ne.f32.partialorder %v120, 0.0
  %v126 = vsel %vm122, %v55, %v17
  %v127 = vsel %vm123, %v58, %v18
  %v128 = vsel %vm124, %v61, %v19
  %v129 = vsel %vm125, %v64, %v20
  %130 = vst [vmem:[%s4] sm:$0xff] %v126
  %131 = vst [vmem:[%s4 + $0x8] sm:$0xff] %v127
  %132 = vst [vmem:[%s4 + $0x10] sm:$0xff] %v128
  %133 = vst [vmem:[%s4 + $0x18] sm:$0xff] %v129
  // Predicated region
  $region18: #{deletion_layer_kg.1} parent=0 // pred_check
    _
  $region19: #{deletion_layer_kg.1} parent=0 // pred_check_branch
    %135 = sbr.rel (0) target = $region21
  $region20: #{deletion_layer_kg.1} parent=0 // pred_region
    _
  $region21: #{deletion_layer_kg.1} parent=0 // pred_fallthru
    _
  // Predicated region
  $region22: #{deletion_layer_kg.1} parent=0 // pred_check
    _
  $region23: #{deletion_layer_kg.1} parent=0 // pred_check_branch
    %137 = sbr.rel (0) target = $region25
  $region24: #{deletion_layer_kg.1} parent=0 // pred_region
    _
  $region25: #{deletion_layer_kg.1} parent=0 // pred_fallthru
    _

</llo_original>
